<compile_context>
chip_gen: v7x
topology: tpu7x:2x2x1
jax: 0.10.0
libtpu: 0.0.40
codegen_flags: <defaults>
</compile_context>

<pallas_src>
import functools

import jax
import jax.numpy as jnp
from jax.experimental import pallas as pl
from jax.experimental.pallas import tpu as pltpu


def _round_up(x, m):
    return ((x + m - 1) // m) * m


# ----------------------------- Pallas kernel -------------------------------

def _conv_bn_hswish_kernel(x_ref, xh_ref, w_ref, s_ref, b_ref, o_ref,
                           *, offsets, tq, act):
    # x_ref : (1, C1p, TQ)        bf16  main tile of the flattened padded input
    # xh_ref: (1, C1p, HALO)      bf16  halo block = first HALO lanes of tile j+1
    # w_ref : (C2, k*k*C1p)       bf16  conv weight, K ordered (tap, channel)
    # s_ref : (C2, 1)             f32   BN scale  gamma / sqrt(var + eps)
    # b_ref : (C2, 1)             f32   BN bias   beta - mean * scale
    # o_ref : (1, C2, TQ)               output tile, lane-dense along TQ
    if max(offsets) > 0:
        xa = jnp.concatenate([x_ref[0], xh_ref[0]], axis=-1)   # (C1p, TQ+HALO)
    else:
        xa = x_ref[0]                                          # k == 1: no halo

    # Stack the k*k statically lane-shifted taps along sublanes and contract
    # all of them in one MXU GEMM with K = k*k*C1p.
    xk = jnp.concatenate([xa[:, off:off + tq] for off in offsets], axis=0)
    acc = jnp.dot(w_ref[...], xk, preferred_element_type=jnp.float32)  # (C2,TQ)

    y = acc * s_ref[...] + b_ref[...]                 # BN affine in f32
    if act:
        # Hardswish: x * relu6(x + 3) / 6
        y = y * jnp.clip(y + 3.0, 0.0, 6.0) * (1.0 / 6.0)
    o_ref[0] = y.astype(o_ref.dtype)


# ------------------------------- wrapper ------------------------------------

def _choose_tq(c1p, c2, kk, halo, q_need, n_batch, out_bytes):
    """Spatial (lane) tile length: multiple of HALO, VMEM-budgeted."""
    # Per-lane VMEM bytes: double-buffered bf16 input block, double-buffered
    # output block, plus in-kernel concat / stacked-tap / f32 accum temporaries.
    per_q = 2 * (2 * c1p) + 2 * (out_bytes * c2) + 2 * c1p + 2 * kk * c1p + 2 * 4 * c2
    budget = 24 << 20                       # pipelined-block budget (see vmem_limit)
    tq = budget // max(per_q, 1)
    tq = min(tq, 4096, _round_up(q_need, halo))
    if n_batch == 1 and q_need > halo:
        # Keep at least two spatial tiles so both v7x TensorCores get work.
        tq = min(tq, _round_up(pl.cdiv(q_need, 2), halo))
    return max(halo, (tq // halo) * halo)


def conv_bn_hardswish(x, weight, gamma, beta, running_mean, running_var,
                      *, k, s, act=True, eps=1e-5, out_dtype=jnp.float32):
    """Forward of the PyTorch `Conv` module (Conv2d no-bias + BN eval + Hardswish).

    x: (N, C1, H, W) float32, weight: (C2, C1, k, k). Returns (N, C2, Ho, Wo) NCHW.
    """
    if s != 1:
        # TODO(synk): stride > 1 not supported by the flattened-offset implicit GEMM.
        raise NotImplementedError("conv_bn_hardswish Pallas kernel supports s=1 only")

    N, C1, H, W = x.shape
    C2 = weight.shape[0]
    pad = k // 2
    Hp, Wp = H + 2 * pad, W + 2 * pad
    Ho, Wo = Hp - k + 1, Wp - k + 1

    C1p = _round_up(C1, 16)                   # align channels for sublane stacking
    max_off = (k - 1) * (Wp + 1)              # largest tap offset
    halo = max(128, _round_up(max_off, 128))  # 128-lane aligned; divides tq
    q_need = Ho * Wp
    out_bytes = jnp.dtype(out_dtype).itemsize

    tq = _choose_tq(C1p, C2, k * k, halo, q_need, N, out_bytes)
    n_qtiles = pl.cdiv(q_need, tq)
    lo_pad = n_qtiles * tq                    # padded flattened output length
    li_need = lo_pad + halo                   # + halo block for the last tile
    hb = tq // halo                           # halo blocks per main tile

    # --- input: ONE fused pad (channels + spatial + extra bottom rows) + bf16
    #     cast; reshape (free, no transpose) to the flattened padded layout. ---
    h_rows = pl.cdiv(li_need, Wp)             # >= Hp, covers all tiles + halo
    xf = jnp.pad(x.astype(jnp.bfloat16),
                 ((0, 0), (0, C1p - C1), (pad, h_rows - pad - H), (pad, pad)))
    xf = xf.reshape(N, C1p, h_rows * Wp)

    # --- weight: (C2, C1, k, k) -> (C2, k*k*C1p), K index = (ki*k+kj)*C1p + c ---
    wt = weight.transpose(0, 2, 3, 1)                          # (C2, k, k, C1)
    wt = jnp.pad(wt, ((0, 0), (0, 0), (0, 0), (0, C1p - C1)))
    wf = wt.reshape(C2, k * k * C1p).astype(jnp.bfloat16)

    # --- BN (eval mode): applied as f32 scale/bias in the kernel epilogue ---
    scale_v = gamma / jnp.sqrt(running_var + eps)
    scale = scale_v.reshape(C2, 1).astype(jnp.float32)
    bias = (beta - running_mean * scale_v).reshape(C2, 1).astype(jnp.float32)

    offsets = tuple(ki * Wp + kj for ki in range(k) for kj in range(k))

    kernel = functools.partial(_conv_bn_hswish_kernel,
                               offsets=offsets, tq=tq, act=act)

    out_flat = pl.pallas_call(
        kernel,
        out_shape=jax.ShapeDtypeStruct((N, C2, lo_pad), out_dtype),
        grid_spec=pltpu.PrefetchScalarGridSpec(
            num_scalar_prefetch=0,
            grid=(N, n_qtiles),
            in_specs=[
                pl.BlockSpec((1, C1p, tq), lambda n, j: (n, 0, j)),           # main
                pl.BlockSpec((1, C1p, halo),
                             lambda n, j: (n, 0, (j + 1) * hb)),              # halo
                pl.BlockSpec((C2, k * k * C1p), lambda n, j: (0, 0)),         # weight
                pl.BlockSpec((C2, 1), lambda n, j: (0, 0)),                   # BN scale
                pl.BlockSpec((C2, 1), lambda n, j: (0, 0)),                   # BN bias
            ],
            out_specs=pl.BlockSpec((1, C2, tq), lambda n, j: (n, 0, j)),
        ),
        compiler_params=pltpu.CompilerParams(
            dimension_semantics=("parallel", "parallel"),
            # Lift v5e/v6e scoped-VMEM defaults; stays under v7x's 64 MiB physical.
            vmem_limit_bytes=48 * 1024 * 1024),
    )(xf, xf, wf, scale, bias)

    # Valid region: q = ho*Wp + wo with wo < Wo; output is already channel-first.
    # (A fused consumer could skip this strip and take the Wp-strided layout.)
    out = out_flat[:, :, :Ho * Wp].reshape(N, C2, Ho, Wp)[:, :, :, :Wo]
    return out


# ------------------------------ reference ----------------------------------

def _reference(x, weight, gamma, beta, mean, var, *, k, s, eps=1e-5):
    y = jax.lax.conv_general_dilated(
        x, weight, window_strides=(s, s),
        padding=[(k // 2, k // 2), (k // 2, k // 2)],
        dimension_numbers=("NCHW", "OIHW", "NCHW"))
    scale = (gamma / jnp.sqrt(var + eps)).reshape(1, -1, 1, 1)
    bias = (beta - mean * gamma / jnp.sqrt(var + eps)).reshape(1, -1, 1, 1)
    y = y * scale + bias
    return y * jnp.clip(y + 3.0, 0.0, 6.0) / 6.0


# --------------------------------- main -------------------------------------

if __name__ == "__main__":
    key = jax.random.PRNGKey(0)
    k_x, k_w, k_g, k_b, k_m, k_v = jax.random.split(key, 6)

    N, C1, H, W = 2, 4, 16, 16
    C2, ksize, stride = 8, 3, 1

    x = jax.random.normal(k_x, (N, C1, H, W), dtype=jnp.float32)
    weight = jax.random.normal(k_w, (C2, C1, ksize, ksize), dtype=jnp.float32) * 0.1
    gamma = jax.random.normal(k_g, (C2,), dtype=jnp.float32) * 0.1 + 1.0
    beta = jax.random.normal(k_b, (C2,), dtype=jnp.float32) * 0.1
    running_mean = jax.random.normal(k_m, (C2,), dtype=jnp.float32) * 0.1
    running_var = jax.random.uniform(k_v, (C2,), dtype=jnp.float32,
                                     minval=0.5, maxval=1.5)

    fwd = functools.partial(conv_bn_hardswish, k=ksize, s=stride)
    out = jax.block_until_ready(fwd(x, weight, gamma, beta,
                                    running_mean, running_var))

    ref = _reference(x, weight, gamma, beta, running_mean, running_var,
                     k=ksize, s=stride)
    assert out.shape == (N, C2, H, W)
    # bf16 MXU operands -> relaxed tolerance.
    max_err = float(jnp.max(jnp.abs(out - ref)))
    assert jnp.allclose(out, ref, atol=2e-2, rtol=2e-2), f"mismatch: {max_err}"

    print("KERNEL_OK")
</pallas_src>

<mosaic_0001>
module attributes {stable_mosaic.version = 11 : i64} {
  func.func @_conv_bn_hswish_kernel(%arg0: i32, %arg1: i32, %arg2: memref<1x16x384xbf16, #tpu.memory_space<vmem>>, %arg3: memref<1x16x128xbf16, #tpu.memory_space<vmem>>, %arg4: memref<8x144xbf16, #tpu.memory_space<vmem>>, %arg5: memref<8x1xf32, #tpu.memory_space<vmem>>, %arg6: memref<8x1xf32, #tpu.memory_space<vmem>>, %arg7: memref<1x8x384xf32, #tpu.memory_space<vmem>>) attributes {dimension_semantics = [#tpu.dimension_semantics<parallel>, #tpu.dimension_semantics<parallel>], iteration_bounds = array<i64: 2, 1>, scalar_prefetch = 0 : i64, scratch_operands = 0 : i64, tpu.core_type = #tpu.core_type<tc>, window_params = [{transform_indices = @transform_0, window_bounds = array<i64: 1, 16, 384>}, {transform_indices = @transform_1, window_bounds = array<i64: 1, 16, 128>}, {pipeline_mode = #tpu.pipeline_mode<synchronous>, transform_indices = @transform_2, window_bounds = array<i64: 8, 144>}, {pipeline_mode = #tpu.pipeline_mode<synchronous>, transform_indices = @transform_3, window_bounds = array<i64: 8, 1>}, {pipeline_mode = #tpu.pipeline_mode<synchronous>, transform_indices = @transform_4, window_bounds = array<i64: 8, 1>}, {transform_indices = @transform_5, window_bounds = array<i64: 1, 8, 384>}]} {
    %c0 = arith.constant 0 : index
    %c0_0 = arith.constant 0 : index
    %c0_1 = arith.constant 0 : index
    %0 = vector.load %arg2[%c0, %c0_0, %c0_1] : memref<1x16x384xbf16, #tpu.memory_space<vmem>>, vector<1x16x384xbf16>
    %1 = vector.shape_cast %0 : vector<1x16x384xbf16> to vector<16x384xbf16>
    %c0_2 = arith.constant 0 : index
    %c0_3 = arith.constant 0 : index
    %c0_4 = arith.constant 0 : index
    %2 = vector.load %arg3[%c0_2, %c0_3, %c0_4] : memref<1x16x128xbf16, #tpu.memory_space<vmem>>, vector<1x16x128xbf16>
    %3 = vector.shape_cast %2 : vector<1x16x128xbf16> to vector<16x128xbf16>
    %4 = tpu.concatenate %1, %3 in 1 : vector<16x384xbf16>, vector<16x128xbf16> -> vector<16x512xbf16>
    %5 = vector.extract_strided_slice %4 {offsets = [0, 0], sizes = [16, 384], strides = [1, 1]} : vector<16x512xbf16> to vector<16x384xbf16>
    %6 = vector.extract_strided_slice %4 {offsets = [0, 1], sizes = [16, 384], strides = [1, 1]} : vector<16x512xbf16> to vector<16x384xbf16>
    %7 = vector.extract_strided_slice %4 {offsets = [0, 2], sizes = [16, 384], strides = [1, 1]} : vector<16x512xbf16> to vector<16x384xbf16>
    %8 = vector.extract_strided_slice %4 {offsets = [0, 18], sizes = [16, 384], strides = [1, 1]} : vector<16x512xbf16> to vector<16x384xbf16>
    %9 = vector.extract_strided_slice %4 {offsets = [0, 19], sizes = [16, 384], strides = [1, 1]} : vector<16x512xbf16> to vector<16x384xbf16>
    %10 = vector.extract_strided_slice %4 {offsets = [0, 20], sizes = [16, 384], strides = [1, 1]} : vector<16x512xbf16> to vector<16x384xbf16>
    %11 = vector.extract_strided_slice %4 {offsets = [0, 36], sizes = [16, 384], strides = [1, 1]} : vector<16x512xbf16> to vector<16x384xbf16>
    %12 = vector.extract_strided_slice %4 {offsets = [0, 37], sizes = [16, 384], strides = [1, 1]} : vector<16x512xbf16> to vector<16x384xbf16>
    %13 = vector.extract_strided_slice %4 {offsets = [0, 38], sizes = [16, 384], strides = [1, 1]} : vector<16x512xbf16> to vector<16x384xbf16>
    %14 = tpu.concatenate %5, %6, %7, %8, %9, %10, %11, %12, %13 in 0 : vector<16x384xbf16>, vector<16x384xbf16>, vector<16x384xbf16>, vector<16x384xbf16>, vector<16x384xbf16>, vector<16x384xbf16>, vector<16x384xbf16>, vector<16x384xbf16>, vector<16x384xbf16> -> vector<144x384xbf16>
    %c0_5 = arith.constant 0 : index
    %c0_6 = arith.constant 0 : index
    %15 = vector.load %arg4[%c0_5, %c0_6] : memref<8x144xbf16, #tpu.memory_space<vmem>>, vector<8x144xbf16>
    %cst = arith.constant dense<0.000000e+00> : vector<8x384xf32>
    %16 = tpu.matmul %15, %14, %cst {dimension_numbers = #tpu.dot_dimension_numbers<[1], [0], [0], [1], [0, 0, 1, 1], [], []>} : vector<8x144xbf16>, vector<144x384xbf16>, vector<8x384xf32> -> vector<8x384xf32>
    %c0_7 = arith.constant 0 : index
    %c0_8 = arith.constant 0 : index
    %17 = vector.load %arg5[%c0_7, %c0_8] : memref<8x1xf32, #tpu.memory_space<vmem>>, vector<8x1xf32>
    %18 = vector.broadcast %17 : vector<8x1xf32> to vector<8x384xf32>
    %19 = arith.mulf %16, %18 : vector<8x384xf32>
    %c0_9 = arith.constant 0 : index
    %c0_10 = arith.constant 0 : index
    %20 = vector.load %arg6[%c0_9, %c0_10] : memref<8x1xf32, #tpu.memory_space<vmem>>, vector<8x1xf32>
    %21 = vector.broadcast %20 : vector<8x1xf32> to vector<8x384xf32>
    %22 = arith.addf %19, %21 : vector<8x384xf32>
    %cst_11 = arith.constant 3.000000e+00 : f32
    %23 = vector.broadcast %cst_11 : f32 to vector<8x384xf32>
    %24 = arith.addf %22, %23 : vector<8x384xf32>
    %cst_12 = arith.constant 0.000000e+00 : f32
    %cst_13 = arith.constant 6.000000e+00 : f32
    %25 = vector.broadcast %cst_12 : f32 to vector<8x384xf32>
    %26 = arith.maximumf %25, %24 : vector<8x384xf32>
    %27 = vector.broadcast %cst_13 : f32 to vector<8x384xf32>
    %28 = arith.minimumf %27, %26 : vector<8x384xf32>
    %29 = arith.mulf %22, %28 : vector<8x384xf32>
    %cst_14 = arith.constant 0.166666672 : f32
    %30 = vector.broadcast %cst_14 : f32 to vector<8x384xf32>
    %31 = arith.mulf %29, %30 : vector<8x384xf32>
    %c0_15 = arith.constant 0 : index
    %c0_16 = arith.constant 0 : index
    %c0_17 = arith.constant 0 : index
    %32 = vector.load %arg7[%c0_15, %c0_16, %c0_17] : memref<1x8x384xf32, #tpu.memory_space<vmem>>, vector<1x8x384xf32>
    %33 = vector.shape_cast %32 : vector<1x8x384xf32> to vector<8x384xf32>
    %34 = vector.shape_cast %31 : vector<8x384xf32> to vector<1x8x384xf32>
    tpu.vector_store %arg7[%c0_15, %c0_16, %c0_17], %34 {strides = array<i32>} : memref<1x8x384xf32, #tpu.memory_space<vmem>>, vector<1x8x384xf32>,
    return
  }
  func.func @transform_0(%arg0: i32, %arg1: i32) -> (i32, i32, i32) {
    %c0_i32 = arith.constant 0 : i32
    %c0_i32_0 = arith.constant 0 : i32
    return %arg0, %c0_i32, %arg1 : i32, i32, i32
  }
  func.func @transform_1(%arg0: i32, %arg1: i32) -> (i32, i32, i32) {
    %c1_i32 = arith.constant 1 : i32
    %0 = arith.addi %arg1, %c1_i32 : i32
    %c3_i32 = arith.constant 3 : i32
    %1 = arith.muli %0, %c3_i32 : i32
    %c0_i32 = arith.constant 0 : i32
    %c0_i32_0 = arith.constant 0 : i32
    return %arg0, %c0_i32, %1 : i32, i32, i32
  }
  func.func @transform_2(%arg0: i32, %arg1: i32) -> (i32, i32) {
    %c0_i32 = arith.constant 0 : i32
    %c0_i32_0 = arith.constant 0 : i32
    %c0_i32_1 = arith.constant 0 : i32
    return %c0_i32, %c0_i32_0 : i32, i32
  }
  func.func @transform_3(%arg0: i32, %arg1: i32) -> (i32, i32) {
    %c0_i32 = arith.constant 0 : i32
    %c0_i32_0 = arith.constant 0 : i32
    %c0_i32_1 = arith.constant 0 : i32
    return %c0_i32, %c0_i32_0 : i32, i32
  }
  func.func @transform_4(%arg0: i32, %arg1: i32) -> (i32, i32) {
    %c0_i32 = arith.constant 0 : i32
    %c0_i32_0 = arith.constant 0 : i32
    %c0_i32_1 = arith.constant 0 : i32
    return %c0_i32, %c0_i32_0 : i32, i32
  }
  func.func @transform_5(%arg0: i32, %arg1: i32) -> (i32, i32, i32) {
    %c0_i32 = arith.constant 0 : i32
    %c0_i32_0 = arith.constant 0 : i32
    return %arg0, %c0_i32, %arg1 : i32, i32, i32
  }
}

</mosaic_0001>

<llo_original>
// kernel: tpu_custom_call.1
$region0: #{tpu_custom_call.1}
  #allocation0 [shape = 'u32[]', space=smem, size = 0x4, offset = 0x4, fixed_abs, tag = 'smem constant byte address 0x4 - core index']
  #allocation1 [shape = 'u32[144,128]{1,0:T(1,128)}', space=vmem, size = 0x12000, scoped, tag = 'internal scratch']
  %s0 = inlined_call_operand.hbm [shape: bf16[2,16,522], index: 0, kind: input, shape index: {}]
  %s1 = inlined_call_operand.hbm [shape: bf16[2,16,522], index: 1, kind: input, shape index: {}]
  %s2 = inlined_call_operand.vmem [shape: bf16[8,144], index: 2, kind: input, shape index: {}]
  %s3 = inlined_call_operand.vmem [shape: f32[8,1], index: 3, kind: input, shape index: {}]
  %s4 = inlined_call_operand.vmem [shape: f32[8,1], index: 4, kind: input, shape index: {}]
  %s5 = inlined_call_operand.hbm [shape: f32[2,8,384], index: 5, kind: output, shape index: {}]
  %s6 = sld [smem:[#allocation0]]
  $region61: #{tpu_custom_call.1} parent=0
    _
  %s8 = ssub.s32 1, %s6
  %s9 = scalar_select 0, %s8, %s6
  $region1: #{tpu_custom_call.1} parent=0
    #allocation2 [shape = 'u8[24576]{0}', space=vmem, size = 0x6000, scoped, tag = 'input window, operand 0']
    #allocation3 [shape = 's32[2]{0}', space=sflag, size = 0x8, scoped, tag = 'scoped memory for tpu_custom_call.1']
    #allocation4 [shape = 's32[2]{0}', space=sflag, size = 0x8, scoped, tag = 'scoped memory for tpu_custom_call.1']
    #allocation5 [shape = 'u8[8192]{0}', space=vmem, size = 0x2000, scoped, tag = 'input window, operand 1']
    #allocation6 [shape = 's32[2]{0}', space=sflag, size = 0x8, scoped, tag = 'scoped memory for tpu_custom_call.1']
    #allocation7 [shape = 'u8[24576]{0}', space=vmem, size = 0x6000, scoped, tag = 'output window, operand 0']
    %10 = vsyncpa [#allocation3], 0
    %s11 = scalar_lea.sflag [#allocation3], 1
    %12 = vsyncpa %s11, 0
    %13 = vsyncpa [#allocation6], 0
    %s14 = scalar_lea.sflag [#allocation6], 1
    %15 = vsyncpa %s14, 0
    %16 = vsyncpa [#allocation4], 0
    %s17 = scalar_lea.sflag [#allocation4], 1
    %18 = vsyncpa %s17, 0
    loop: start=0, step=1, limit=4
    $region2: #{tpu_custom_call.1} parent=1 // loop_pre_header
      _
    $region3: #{tpu_custom_call.1} parent=1 // loop_header
      %s20 = sphi 0, %s24
      %p21 = scmp.ge.s32.totalorder %s20, 4
      %s27 = sphi 0, %s39
      %s28 = sphi 0, %s35
      %s29 = sphi 0, %s27
      %s30 = sphi 0, %s28
      %s31 = sphi 0, %s29
      %s32 = sphi 0, %s30
      %s44 = sphi 0, %s46
      %s47 = sphi 0, %s44
      %s48 = sphi 0, %s47
      %s64 = sphi 0, %s48
      %s76 = sphi 0, %s78
      %s79 = sphi 0, %s76
      %s80 = sphi 0, %s79
      %s96 = sphi 0, %s80
      %s100 = sphi 0, %s100
      %s102 = sphi 0, %s100
      %s103 = sphi 0, %s102
      %s117 = sphi 0, %s103
      %s121 = sphi 0, %s121
      %s123 = sphi 0, %s121
      %s124 = sphi 0, %s123
      %s138 = sphi 0, %s124
      %s142 = sphi 0, %s142
      %s144 = sphi 0, %s142
      %s145 = sphi 0, %s144
      %s159 = sphi 0, %s145
      %s167 = sphi 0, %s169
      %s170 = sphi 0, %s167
      %s171 = sphi 0, %s170
      %s187 = sphi 0, %s171
    $region4: #{tpu_custom_call.1} parent=1 // loop_header_branch
      %23 = sbr.rel (%p21) target = $region8
    $region5: #{tpu_custom_call.1} parent=1 // loop_body
      %s25 = ssub.s32 %s20, 1
      %s26 = ssub.s32 %s20, 2
      %s33 = sadd.s32 1, %s28
      %p34 = scmp.ge.s32.totalorder %s33, 1
      %s35 = scalar_select %p34, 0, %s33
      %s36 = sadd.s32 1, %s27
      %s37 = scalar_select %p34, %s36, %s27
      %p38 = scmp.ge.s32.totalorder %s37, 2
      %s39 = scalar_select %p38, 0, %s37
      %s40 = ssub.s32 %s27, %s39
      %s41 = ssub.s32 %s28, %s35
      %s42 = sor.u32 %s40, %s41
      %p43 = scmp.eq.s32.totalorder %s42, 0
      %s45 = sadd.s32 %s44, 1
      %s46 = scalar_select %p43, %s44, %s45
      %p49 = pneg %p43
      %p50 = scmp.eq.s32.totalorder %s20, 1
      %p51 = por %p49, %p50
      %p52 = scmp.ne.s32.totalorder %s44, %s47
      %p53 = scmp.eq.s32.totalorder %s20, 0
      %p54 = por %p52, %p53
      %p55 = scmp.ne.s32.totalorder %s44, %s47
      %p56 = scmp.eq.s32.totalorder %s25, 1
      %p57 = por %p55, %p56
      %p58 = scmp.ne.s32.totalorder %s47, %s48
      %p59 = scmp.eq.s32.totalorder %s25, 0
      %p60 = por %p58, %p59
      %p61 = scmp.ne.s32.totalorder %s47, %s48
      %p62 = scmp.eq.s32.totalorder %s26, 1
      %p63 = por %p61, %p62
      %p65 = scmp.ne.s32.totalorder %s48, %s64
      %p66 = scmp.eq.s32.totalorder %s26, 0
      %p67 = por %p65, %p66
      %s68 = sadd.s32 %s28, 1
      %s69 = smul.u32 %s68, 3
      %s70 = sadd.s32 %s35, 1
      %s71 = smul.u32 %s70, 3
      %s72 = ssub.s32 %s27, %s39
      %s73 = ssub.s32 %s69, %s71
      %s74 = sor.u32 %s72, %s73
      %p75 = scmp.eq.s32.totalorder %s74, 0
      %s77 = sadd.s32 %s76, 1
      %s78 = scalar_select %p75, %s76, %s77
      %p81 = pneg %p75
      %p82 = scmp.eq.s32.totalorder %s20, 1
      %p83 = por %p81, %p82
      %p84 = scmp.ne.s32.totalorder %s76, %s79
      %p85 = scmp.eq.s32.totalorder %s20, 0
      %p86 = por %p84, %p85
      %p87 = scmp.ne.s32.totalorder %s76, %s79
      %p88 = scmp.eq.s32.totalorder %s25, 1
      %p89 = por %p87, %p88
      %p90 = scmp.ne.s32.totalorder %s79, %s80
      %p91 = scmp.eq.s32.totalorder %s25, 0
      %p92 = por %p90, %p91
      %p93 = scmp.ne.s32.totalorder %s79, %s80
      %p94 = scmp.eq.s32.totalorder %s26, 1
      %p95 = por %p93, %p94
      %p97 = scmp.ne.s32.totalorder %s80, %s96
      %p98 = scmp.eq.s32.totalorder %s26, 0
      %p99 = por %p97, %p98
      %s101 = sadd.s32 %s100, 1
      %p104 = scmp.eq.s32.totalorder %s20, 1
      %p105 = scmp.ne.s32.totalorder %s100, %s102
      %p106 = scmp.eq.s32.totalorder %s20, 0
      %p107 = por %p105, %p106
      %p108 = scmp.ne.s32.totalorder %s100, %s102
      %p109 = scmp.eq.s32.totalorder %s25, 1
      %p110 = por %p108, %p109
      %p111 = scmp.ne.s32.totalorder %s102, %s103
      %p112 = scmp.eq.s32.totalorder %s25, 0
      %p113 = por %p111, %p112
      %p114 = scmp.ne.s32.totalorder %s102, %s103
      %p115 = scmp.eq.s32.totalorder %s26, 1
      %p116 = por %p114, %p115
      %p118 = scmp.ne.s32.totalorder %s103, %s117
      %p119 = scmp.eq.s32.totalorder %s26, 0
      %p120 = por %p118, %p119
      %s122 = sadd.s32 %s121, 1
      %p125 = scmp.eq.s32.totalorder %s20, 1
      %p126 = scmp.ne.s32.totalorder %s121, %s123
      %p127 = scmp.eq.s32.totalorder %s20, 0
      %p128 = por %p126, %p127
      %p129 = scmp.ne.s32.totalorder %s121, %s123
      %p130 = scmp.eq.s32.totalorder %s25, 1
      %p131 = por %p129, %p130
      %p132 = scmp.ne.s32.totalorder %s123, %s124
      %p133 = scmp.eq.s32.totalorder %s25, 0
      %p134 = por %p132, %p133
      %p135 = scmp.ne.s32.totalorder %s123, %s124
      %p136 = scmp.eq.s32.totalorder %s26, 1
      %p137 = por %p135, %p136
      %p139 = scmp.ne.s32.totalorder %s124, %s138
      %p140 = scmp.eq.s32.totalorder %s26, 0
      %p141 = por %p139, %p140
      %s143 = sadd.s32 %s142, 1
      %p146 = scmp.eq.s32.totalorder %s20, 1
      %p147 = scmp.ne.s32.totalorder %s142, %s144
      %p148 = scmp.eq.s32.totalorder %s20, 0
      %p149 = por %p147, %p148
      %p150 = scmp.ne.s32.totalorder %s142, %s144
      %p151 = scmp.eq.s32.totalorder %s25, 1
      %p152 = por %p150, %p151
      %p153 = scmp.ne.s32.totalorder %s144, %s145
      %p154 = scmp.eq.s32.totalorder %s25, 0
      %p155 = por %p153, %p154
      %p156 = scmp.ne.s32.totalorder %s144, %s145
      %p157 = scmp.eq.s32.totalorder %s26, 1
      %p158 = por %p156, %p157
      %p160 = scmp.ne.s32.totalorder %s145, %s159
      %p161 = scmp.eq.s32.totalorder %s26, 0
      %p162 = por %p160, %p161
      %s163 = ssub.s32 %s27, %s39
      %s164 = ssub.s32 %s28, %s35
      %s165 = sor.u32 %s163, %s164
      %p166 = scmp.eq.s32.totalorder %s165, 0
      %s168 = sadd.s32 %s167, 1
      %s169 = scalar_select %p166, %s167, %s168
      %p172 = pneg %p166
      %p173 = scmp.eq.s32.totalorder %s20, 1
      %p174 = por %p172, %p173
      %p175 = scmp.ne.s32.totalorder %s167, %s170
      %p176 = scmp.eq.s32.totalorder %s20, 0
      %p177 = por %p175, %p176
      %p178 = scmp.ne.s32.totalorder %s167, %s170
      %p179 = scmp.eq.s32.totalorder %s25, 1
      %p180 = por %p178, %p179
      %p181 = scmp.ne.s32.totalorder %s170, %s171
      %p182 = scmp.eq.s32.totalorder %s25, 0
      %p183 = por %p181, %p182
      %p184 = scmp.ne.s32.totalorder %s170, %s171
      %p185 = scmp.eq.s32.totalorder %s26, 1
      %p186 = por %p184, %p185
      %p188 = scmp.ne.s32.totalorder %s171, %s187
      %p189 = scmp.eq.s32.totalorder %s26, 0
      %p190 = por %p188, %p189
      %p191 = scmp.le.s32.totalorder 1, %s20
      %p192 = scmp.lt.s32.totalorder %s20, 3
      %p193 = pnand %p191, %p192
      %p194 = pneg %p193
      // Predicated region
      $region9: #{tpu_custom_call.1} parent=5 // pred_check
        _
      $region10: #{tpu_custom_call.1} parent=5 // pred_check_branch
        %196 = sbr.rel (%p193) target = $region12
      $region11: #{tpu_custom_call.1} parent=5 // pred_region
        %s197 = ssub.s32 %s20, 1
        // Predicated region
        $region13: #{tpu_custom_call.1} parent=11 // pred_check
          %p198 = pneg %p113
        $region14: #{tpu_custom_call.1} parent=11 // pred_check_branch
          %200 = sbr.rel (%p198) target = $region16
        $region15: #{tpu_custom_call.1} parent=11 // pred_region
          _
        $region16: #{tpu_custom_call.1} parent=11 // pred_fallthru
          _
        // Predicated region
        $region17: #{tpu_custom_call.1} parent=11 // pred_check
          %p201 = pneg %p134
        $region18: #{tpu_custom_call.1} parent=11 // pred_check_branch
          %203 = sbr.rel (%p201) target = $region20
        $region19: #{tpu_custom_call.1} parent=11 // pred_region
          _
        $region20: #{tpu_custom_call.1} parent=11 // pred_fallthru
          _
        // Predicated region
        $region21: #{tpu_custom_call.1} parent=11 // pred_check
          %p204 = pneg %p155
        $region22: #{tpu_custom_call.1} parent=11 // pred_check_branch
          %206 = sbr.rel (%p204) target = $region24
        $region23: #{tpu_custom_call.1} parent=11 // pred_region
          _
        $region24: #{tpu_custom_call.1} parent=11 // pred_fallthru
          _
      $region12: #{tpu_custom_call.1} parent=5 // pred_fallthru
        _
      %p207 = scmp.lt.s32.totalorder %s20, 2
      // Predicated region
      $region25: #{tpu_custom_call.1} parent=5 // pred_check
        %p208 = pneg %p207
      $region26: #{tpu_custom_call.1} parent=5 // pred_check_branch
        %210 = sbr.rel (%p208) target = $region28
      $region27: #{tpu_custom_call.1} parent=5 // pred_region
        // Predicated region
        $region29: #{tpu_custom_call.1} parent=27 // pred_check
          %p211 = pneg %p54
        $region30: #{tpu_custom_call.1} parent=27 // pred_check_branch
          %213 = sbr.rel (%p211) target = $region32
        $region31: #{tpu_custom_call.1} parent=27 // pred_region
          %s214 = sand.u32 %s44, 1
          %s215 = scalar_lea.sflag [#allocation3], %s214
          %s216 = sand.u32 %s44, 1
          %s217 = smul.addr %s216, 24
          %s218 = scalar_lea.vmem [#allocation2], %s217
          %s219 = smul.u32 3, %s28
          %s220 = ssub.s32 5, %s219
          %p221 = scmp.lt.s32.totalorder %s220, 3
          %s222 = scalar_select %p221, %s220, 3
          %s223 = smul.u32 128, %s222
          %s225 = ssub.s32 384, %s223
          %226 = vsyncadd %s215, %s225
          %p227 = scmp.ne.s32.totalorder 0, %s223
          %s228 = smul.addr %s27, 10
          %s229 = sadd.s32 %s219, %s228
          %s230 = smul.addr %s229, 64
          %s231 = scalar_lea.hbm %s0, %s230
          %s232 = smul.u32 %s222, 4
          %s233 = smul.u32 %s232, 2
          %s234 = sshll.u32 %s218, 4
          %s235 = int_to_ptr.vmem [resolvable:$true] %s234
          %s236 = sshll.u32 %s233, 4
          %240 = dma.hbm_to_vmem [thread:$0]  (%p227), %s231, %s236, %s235, %s215, 320, 192, %s232
        $region32: #{tpu_custom_call.1} parent=27 // pred_fallthru
          _
        // Predicated region
        $region33: #{tpu_custom_call.1} parent=27 // pred_check
          %p241 = pneg %p86
        $region34: #{tpu_custom_call.1} parent=27 // pred_check_branch
          %243 = sbr.rel (%p241) target = $region36
        $region35: #{tpu_custom_call.1} parent=27 // pred_region
          %s244 = sand.u32 %s76, 1
          %s245 = scalar_lea.sflag [#allocation6], %s244
          %s246 = sand.u32 %s76, 1
          %s247 = smul.addr %s246, 8
          %s248 = scalar_lea.vmem [#allocation5], %s247
          %s249 = sadd.s32 %s28, 1
          %s250 = smul.u32 %s249, 3
          %s252 = ssub.s32 128, 128
          %253 = vsyncadd %s245, %s252
          %s254 = smul.addr %s27, 10
          %s255 = sadd.s32 %s250, %s254
          %s256 = smul.addr %s255, 64
          %s257 = scalar_lea.hbm %s1, %s256
          %s258 = sshll.u32 %s248, 4
          %s259 = int_to_ptr.vmem [resolvable:$true] %s258
          %264 = dma.hbm_to_vmem [thread:$0]  %s257, 128, %s259, %s245, 320, 64, 4
        $region36: #{tpu_custom_call.1} parent=27 // pred_fallthru
          _
      $region28: #{tpu_custom_call.1} parent=5 // pred_fallthru
        _
      %p265 = scmp.le.s32.totalorder 1, %s20
      %p266 = scmp.lt.s32.totalorder %s20, 3
      %p267 = pnand %p265, %p266
      %p268 = pneg %p267
      // Predicated region
      $region37: #{tpu_custom_call.1} parent=5 // pred_check
        _
      $region38: #{tpu_custom_call.1} parent=5 // pred_check_branch
        %270 = sbr.rel (%p267) target = $region40
      $region39: #{tpu_custom_call.1} parent=5 // pred_region
        %s271 = ssub.s32 %s20, 1
        %s272 = sand.u32 %s47, 1
        %s273 = scalar_lea.sflag [#allocation3], %s272
        %s274 = sand.u32 %s47, 1
        %s275 = smul.addr %s274, 24
        %s276 = scalar_lea.vmem [#allocation2], %s275
        // Predicated region
        $region41: #{tpu_custom_call.1} parent=39 // pred_check
          %p277 = pneg %p60
        $region42: #{tpu_custom_call.1} parent=39 // pred_check_branch
          %279 = sbr.rel (%p277) target = $region44
        $region43: #{tpu_custom_call.1} parent=39 // pred_region
          %280 = dma.done %s273, 384
        $region44: #{tpu_custom_call.1} parent=39 // pred_fallthru
          _
        %s281 = sand.u32 %s79, 1
        %s282 = scalar_lea.sflag [#allocation6], %s281
        %s283 = sand.u32 %s79, 1
        %s284 = smul.addr %s283, 8
        %s285 = scalar_lea.vmem [#allocation5], %s284
        // Predicated region
        $region45: #{tpu_custom_call.1} parent=39 // pred_check
          %p286 = pneg %p92
        $region46: #{tpu_custom_call.1} parent=39 // pred_check_branch
          %288 = sbr.rel (%p286) target = $region48
        $region47: #{tpu_custom_call.1} parent=39 // pred_region
          %289 = dma.done %s282, 128
        $region48: #{tpu_custom_call.1} parent=39 // pred_fallthru
          _
        %s290 = sand.u32 %s47, 1
        %s291 = scalar_lea.sflag [#allocation3], %s290
        %s292 = sand.u32 %s47, 1
        %s293 = smul.addr %s292, 24
        %s294 = scalar_lea.vmem [#allocation2], %s293
        %p295 = pneg %p60
        %p296 = pneg %p57
        %s297 = sand.u32 %s79, 1
        %s298 = scalar_lea.sflag [#allocation6], %s297
        %s299 = sand.u32 %s79, 1
        %s300 = smul.addr %s299, 8
        %s301 = scalar_lea.vmem [#allocation5], %s300
        %p302 = pneg %p92
        %p303 = pneg %p89
        %p304 = pneg %p113
        %p305 = pneg %p110
        %p306 = pneg %p134
        %p307 = pneg %p131
        %p308 = pneg %p155
        %p309 = pneg %p152
        %p310 = pneg %p183
        %p311 = pneg %p180
        %s312 = sand.u32 %s170, 1
        %s313 = scalar_lea.sflag [#allocation4], %s312
        %s314 = sand.u32 %s170, 1
        %s315 = smul.addr %s314, 24
        %s316 = scalar_lea.vmem [#allocation7], %s315
        %s317 = smul.u32 3, %s30
        %s318 = ssub.s32 5, %s317
        %p319 = scmp.lt.s32.totalorder %s318, 3
        %s320 = scalar_select %p319, %s318, 3
        %s321 = smul.u32 128, %s320
        %s322 = sadd.s32 %s30, 1
        %s323 = smul.u32 %s322, 3
        %s324 = smul.u32 3, %s30
        %v326 = vld [vmem:[%s276] sm:$0xff]
        %v327 = vld [vmem:[%s276 + $0x8] sm:$0xf]
        %v328 = vld [vmem:[%s276 + $0xc] sm:$0xff]
        %v329 = vld [vmem:[%s276 + $0x14] sm:$0xf]
        %v330 = vld [vmem:[%s285] sm:$0xf]
        %v331 = vld [vmem:[%s285 + $0x4] sm:$0xf]
        %v336 = vunpack.c.l.b16 %v326
        %v337 = vunpack.c.h.b16 %v326
        %v338 = vunpack.c.l.b16 %v327
        %v339 = vunpack.c.l.b16 %v328
        %v340 = vunpack.c.h.b16 %v328
        %v341 = vunpack.c.l.b16 %v329
        %v342 = vpack.c.b16 %v339, %v336
        %v343 = vpack.c.b16 %v340, %v337
        %v344 = vpack.c.b16 %v341, %v338
        %v350 = vunpack.c.l.b16 %v330
        %v351 = vunpack.c.l.b16 %v331
        %v352 = vpack.c.b16 %v351, %v350
        %353 = vrot.lane.b32.xlu0 %v342, 127
        %v354 = vpop.permute.xlu0 %353
        %355 = vrot.lane.b32.xlu0 %v343, 127
        %v356 = vpop.permute.xlu0 %355
        %357 = vrot.lane.b32.xlu0 %v344, 127
        %v358 = vpop.permute.xlu0 %357
        %359 = vrot.lane.b32.xlu0 %v352, 127
        %v360 = vpop.permute.xlu0 %359
        %vm361 = vcmask 1039360
        %v362 = vsel %vm361, %v354, %v356
        %v363 = vsel %vm361, %v356, %v358
        %v364 = vsel %vm361, %v358, %v360
        %368 = vrot.lane.b32.xlu0 %v342, 126
        %v369 = vpop.permute.xlu0 %368
        %370 = vrot.lane.b32.xlu0 %v343, 126
        %v371 = vpop.permute.xlu0 %370
        %372 = vrot.lane.b32.xlu0 %v344, 126
        %v373 = vpop.permute.xlu0 %372
        %374 = vrot.lane.b32.xlu0 %v352, 126
        %v375 = vpop.permute.xlu0 %374
        %vm376 = vcmask 1031168
        %v377 = vsel %vm376, %v369, %v371
        %v378 = vsel %vm376, %v371, %v373
        %v379 = vsel %vm376, %v373, %v375
        %383 = vrot.lane.b32.xlu0 %v342, 110
        %v384 = vpop.permute.xlu0 %383
        %385 = vrot.lane.b32.xlu0 %v343, 110
        %v386 = vpop.permute.xlu0 %385
        %387 = vrot.lane.b32.xlu0 %v344, 110
        %v388 = vpop.permute.xlu0 %387
        %389 = vrot.lane.b32.xlu0 %v352, 110
        %v390 = vpop.permute.xlu0 %389
        %vm391 = vcmask 900096
        %v392 = vsel %vm391, %v384, %v386
        %v393 = vsel %vm391, %v386, %v388
        %v394 = vsel %vm391, %v388, %v390
        %398 = vrot.lane.b32.xlu0 %v342, 109
        %v399 = vpop.permute.xlu0 %398
        %400 = vrot.lane.b32.xlu0 %v343, 109
        %v401 = vpop.permute.xlu0 %400
        %402 = vrot.lane.b32.xlu0 %v344, 109
        %v403 = vpop.permute.xlu0 %402
        %404 = vrot.lane.b32.xlu0 %v352, 109
        %v405 = vpop.permute.xlu0 %404
        %vm406 = vcmask 891904
        %v407 = vsel %vm406, %v399, %v401
        %v408 = vsel %vm406, %v401, %v403
        %v409 = vsel %vm406, %v403, %v405
        %413 = vrot.lane.b32.xlu0 %v342, 108
        %v414 = vpop.permute.xlu0 %413
        %415 = vrot.lane.b32.xlu0 %v343, 108
        %v416 = vpop.permute.xlu0 %415
        %417 = vrot.lane.b32.xlu0 %v344, 108
        %v418 = vpop.permute.xlu0 %417
        %419 = vrot.lane.b32.xlu0 %v352, 108
        %v420 = vpop.permute.xlu0 %419
        %vm421 = vcmask 883712
        %v422 = vsel %vm421, %v414, %v416
        %v423 = vsel %vm421, %v416, %v418
        %v424 = vsel %vm421, %v418, %v420
        %428 = vrot.lane.b32.xlu0 %v342, 92
        %v429 = vpop.permute.xlu0 %428
        %430 = vrot.lane.b32.xlu0 %v343, 92
        %v431 = vpop.permute.xlu0 %430
        %432 = vrot.lane.b32.xlu0 %v344, 92
        %v433 = vpop.permute.xlu0 %432
        %434 = vrot.lane.b32.xlu0 %v352, 92
        %v435 = vpop.permute.xlu0 %434
        %vm436 = vcmask 752640
        %v437 = vsel %vm436, %v429, %v431
        %v438 = vsel %vm436, %v431, %v433
        %v439 = vsel %vm436, %v433, %v435
        %443 = vrot.lane.b32.xlu0 %v342, 91
        %v444 = vpop.permute.xlu0 %443
        %445 = vrot.lane.b32.xlu0 %v343, 91
        %v446 = vpop.permute.xlu0 %445
        %447 = vrot.lane.b32.xlu0 %v344, 91
        %v448 = vpop.permute.xlu0 %447
        %449 = vrot.lane.b32.xlu0 %v352, 91
        %v450 = vpop.permute.xlu0 %449
        %vm451 = vcmask 744448
        %v452 = vsel %vm451, %v444, %v446
        %v453 = vsel %vm451, %v446, %v448
        %v454 = vsel %vm451, %v448, %v450
        %458 = vrot.lane.b32.xlu0 %v342, 90
        %v459 = vpop.permute.xlu0 %458
        %460 = vrot.lane.b32.xlu0 %v343, 90
        %v461 = vpop.permute.xlu0 %460
        %462 = vrot.lane.b32.xlu0 %v344, 90
        %v463 = vpop.permute.xlu0 %462
        %464 = vrot.lane.b32.xlu0 %v352, 90
        %v465 = vpop.permute.xlu0 %464
        %vm466 = vcmask 736256
        %v467 = vsel %vm466, %v459, %v461
        %v468 = vsel %vm466, %v461, %v463
        %v469 = vsel %vm466, %v463, %v465
        %v473 = vld [vmem:[%s2] sm:$0xff]
        %v475 = vunpack.c.l.b16 %v473
        %v476 = vunpack.c.h.b16 %v473
        %v477 = vpack.c.b16 %v475, %v475
        %v478 = vpack.c.b16 %v476, %v476
        %vm480 = vcmask 130048
        %v482 = vsel %vm480, %v478, 0
        %484 = vmatprep.subr.bf16.mxu0 %v343
        %485 = vmatpush1.bf16.msra.mxu0 %v342
        %486 = vmatprep.subr.bf16.mxu0 %v363
        %487 = vmatpush1.bf16.msra.mxu0 %v362
        %488 = vmatprep.subr.bf16.mxu0 %v378
        %489 = vmatpush1.bf16.msra.mxu0 %v377
        %490 = vmatprep.subr.bf16.mxu0 %v393
        %491 = vmatpush1.bf16.msra.mxu0 %v392
        %492 = vmatprep.subr.bf16.mxu0 %v408
        %493 = vmatpush1.bf16.msra.mxu0 %v407
        %494 = vmatprep.subr.bf16.mxu0 %v423
        %495 = vmatpush1.bf16.msra.mxu0 %v422
        %496 = vmatprep.subr.bf16.mxu0 %v438
        %497 = vmatpush1.bf16.msra.mxu0 %v437
        %498 = vmatprep.subr.bf16.mxu0 %v453
        %499 = vmatpush1.bf16.msra.mxu0 %v452
        %500 = vmatprep.subr.bf16.mxu0 %v468
        %501 = vmatpush1.bf16.msra.mxu0 %v467
        %502 = vmatprep.subr.bf16.mxu0 0
        %503 = vmatpush1.bf16.msra.mxu0 0
        %504 = vmatprep.subr.bf16.mxu0 0
        %505 = vmatpush1.bf16.msra.mxu0 0
        %506 = vmatprep.subr.bf16.mxu0 0
        %507 = vmatpush1.bf16.msra.mxu0 0
        %508 = vmatprep.subr.bf16.mxu0 0
        %509 = vmatpush1.bf16.msra.mxu0 0
        %510 = vmatprep.subr.bf16.mxu0 0
        %511 = vmatpush1.bf16.msra.mxu0 0
        %512 = vmatprep.subr.bf16.mxu0 0
        %513 = vmatpush1.bf16.msra.mxu0 0
        %514 = vmatprep.subr.bf16.mxu0 0
        %515 = vmatpush1.bf16.msra.mxu0 0
        %516 = vmatprep.mubr.bf16.mxu0 %v482
        %517 = vmatmul.mubr.bf16.gmra.mrb[0].mxu0 %v477
        %v518 = vpop.f32.mrb[0].mxu0
        %v519 = vadd.f32 0.0, %v518
        %v520 = vpop.f32.mrb[0].mxu0
        %v521 = vadd.f32 0.0, %v520
        %v522 = vpop.f32.mrb[0].mxu0
        %v523 = vpop.f32.mrb[0].mxu0
        %524 = vdwg.mxu0
        %525 = vmatprep.subr.bf16.mxu0 0
        %526 = vmatpush1.bf16.msra.mxu0 %v344
        %527 = vmatprep.subr.bf16.mxu0 0
        %528 = vmatpush1.bf16.msra.mxu0 %v364
        %529 = vmatprep.subr.bf16.mxu0 0
        %530 = vmatpush1.bf16.msra.mxu0 %v379
        %531 = vmatprep.subr.bf16.mxu0 0
        %532 = vmatpush1.bf16.msra.mxu0 %v394
        %533 = vmatprep.subr.bf16.mxu0 0
        %534 = vmatpush1.bf16.msra.mxu0 %v409
        %535 = vmatprep.subr.bf16.mxu0 0
        %536 = vmatpush1.bf16.msra.mxu0 %v424
        %537 = vmatprep.subr.bf16.mxu0 0
        %538 = vmatpush1.bf16.msra.mxu0 %v439
        %539 = vmatprep.subr.bf16.mxu0 0
        %540 = vmatpush1.bf16.msra.mxu0 %v454
        %541 = vmatprep.subr.bf16.mxu0 0
        %542 = vmatpush1.bf16.msra.mxu0 %v469
        %543 = vmatprep.subr.bf16.mxu0 0
        %544 = vmatpush1.bf16.msra.mxu0 0
        %545 = vmatprep.subr.bf16.mxu0 0
        %546 = vmatpush1.bf16.msra.mxu0 0
        %547 = vmatprep.subr.bf16.mxu0 0
        %548 = vmatpush1.bf16.msra.mxu0 0
        %549 = vmatprep.subr.bf16.mxu0 0
        %550 = vmatpush1.bf16.msra.mxu0 0
        %551 = vmatprep.subr.bf16.mxu0 0
        %552 = vmatpush1.bf16.msra.mxu0 0
        %553 = vmatprep.subr.bf16.mxu0 0
        %554 = vmatpush1.bf16.msra.mxu0 0
        %555 = vmatprep.subr.bf16.mxu0 0
        %556 = vmatpush1.bf16.msra.mxu0 0
        %557 = vmatprep.mubr.bf16.mxu0 %v482
        %558 = vmatmul.mubr.bf16.gmra.mrb[0].mxu0 %v477
        %v559 = vpop.f32.mrb[0].mxu0
        %v560 = vadd.f32 0.0, %v559
        %v561 = vpop.f32.mrb[0].mxu0
        %v562 = vpop.f32.mrb[0].mxu0
        %v563 = vpop.f32.mrb[0].mxu0
        %564 = vdwg.mxu0
        %v565 = vld [vmem:[%s3] sm:$0xff]
        %567 = vset.pattern.permute.xlu0 0
        %568 = vperm.xlu0 %567, %v565
        %v569 = vpop.permute.xlu0 %568
        %v571 = vmul.f32 %v519, %v569
        %v572 = vmul.f32 %v521, %v569
        %v573 = vmul.f32 %v560, %v569
        %v574 = vld [vmem:[%s4] sm:$0xff]
        %576 = vset.pattern.permute.xlu0 0
        %577 = vperm.xlu0 %576, %v574
        %v578 = vpop.permute.xlu0 %577
        %v580 = vadd.f32 %v571, %v578
        %v581 = vadd.f32 %v572, %v578
        %v582 = vadd.f32 %v573, %v578
        %v583 = vadd.f32 %v580, 3.0
        %v584 = vadd.f32 %v581, 3.0
        %v585 = vadd.f32 %v582, 3.0
        %v586 = vmax.f32 %v583, 0.0
        %v587 = vmax.f32 %v584, 0.0
        %v588 = vmax.f32 %v585, 0.0
        %v589 = vmin.f32 %v586, 6.0
        %v590 = vmin.f32 %v587, 6.0
        %v591 = vmin.f32 %v588, 6.0
        %v592 = vmul.f32 %v580, %v589
        %v593 = vmul.f32 %v581, %v590
        %v594 = vmul.f32 %v582, %v591
        %v595 = vmul.f32 %v592, 0.16666667
        %v596 = vmul.f32 %v593, 0.16666667
        %v597 = vmul.f32 %v594, 0.16666667
        %598 = vst [vmem:[%s316] sm:$0xff] %v595
        %599 = vst [vmem:[%s316 + $0x8] sm:$0xff] %v596
        %600 = vst [vmem:[%s316 + $0x10] sm:$0xff] %v597
        %s601 = sand.u32 %s170, 1
        %s602 = scalar_lea.sflag [#allocation4], %s601
        %s603 = sand.u32 %s170, 1
        %s604 = smul.addr %s603, 24
        %s605 = scalar_lea.vmem [#allocation7], %s604
        // Predicated region
        $region49: #{tpu_custom_call.1} parent=39 // pred_check
          %p606 = pneg %p180
        $region50: #{tpu_custom_call.1} parent=39 // pred_check_branch
          %608 = sbr.rel (%p606) target = $region52
        $region51: #{tpu_custom_call.1} parent=39 // pred_region
          %s609 = smul.u32 3, %s30
          %s611 = ssub.s32 384, 384
          %612 = vsyncadd %s602, %s611
          %s613 = smul.addr %s29, 3
          %s614 = sadd.s32 %s609, %s613
          %s615 = smul.addr %s614, 128
          %s616 = scalar_lea.hbm %s5, %s615
          %s618 = sshll.u32 %s605, 4
          %s619 = int_to_ptr.vmem [resolvable:$true] %s618
          %621 = dma.vmem_to_hbm [thread:$0]  %s619, 384, %s616, %s602
        $region52: #{tpu_custom_call.1} parent=39 // pred_fallthru
          _
      $region40: #{tpu_custom_call.1} parent=5 // pred_fallthru
        _
      %p622 = scmp.le.s32.totalorder 2, %s20
      // Predicated region
      $region53: #{tpu_custom_call.1} parent=5 // pred_check
        %p623 = pneg %p622
      $region54: #{tpu_custom_call.1} parent=5 // pred_check_branch
        %625 = sbr.rel (%p623) target = $region56
      $region55: #{tpu_custom_call.1} parent=5 // pred_region
        %s626 = ssub.s32 %s20, 2
        // Predicated region
        $region57: #{tpu_custom_call.1} parent=55 // pred_check
          %p627 = pneg %p186
        $region58: #{tpu_custom_call.1} parent=55 // pred_check_branch
          %629 = sbr.rel (%p627) target = $region60
        $region59: #{tpu_custom_call.1} parent=55 // pred_region
          %s630 = sand.u32 %s171, 1
          %s631 = scalar_lea.sflag [#allocation4], %s630
          %s632 = sand.u32 %s171, 1
          %s633 = smul.addr %s632, 24
          %s634 = scalar_lea.vmem [#allocation7], %s633
          %635 = dma.done %s631, 384
        $region60: #{tpu_custom_call.1} parent=55 // pred_fallthru
          _
      $region56: #{tpu_custom_call.1} parent=5 // pred_fallthru
        _
    $region6: #{tpu_custom_call.1} parent=1 // loop_footer
      %s24 = sadd.s32 1, %s20
    $region7: #{tpu_custom_call.1} parent=1 // loop_footer_branch
      %19 = sbr.rel target = $region3
    $region8: #{tpu_custom_call.1} parent=1 // loop_exit
      _
    %636 = vsyncpa [#allocation3], 1
    %s637 = scalar_lea.sflag [#allocation3], 1
    %638 = vsyncpa %s637, 1
    %639 = vsyncpa [#allocation6], 1
    %s640 = scalar_lea.sflag [#allocation6], 1
    %641 = vsyncpa %s640, 1
    %642 = vsyncpa [#allocation4], 1
    %s643 = scalar_lea.sflag [#allocation4], 1
    %644 = vsyncpa %s643, 1

</llo_original>
